<compile_context>
chip_gen: v5e
topology: v5e:2x2
jax: 0.10.0
libtpu: 0.0.40
codegen_flags: <defaults>
</compile_context>

<pallas_src>
import jax
import jax.numpy as jnp
from jax.experimental import pallas as pl
from jax.experimental.pallas import tpu as pltpu


def _round_up(x, m):
    return ((x + m - 1) // m) * m


def planar_flow_kernel(x_ref, w_ref, u_ref, b_ref, o_ref):
    # x_ref: (TM, D) in storage dtype; w_ref/u_ref: (1, D) f32; b_ref: (1,1) f32 SMEM.
    x = x_ref[...].astype(jnp.float32)        # compute in f32 (v5e-safe)
    w = w_ref[...]                            # (1, D)
    u = u_ref[...]                            # (1, D)
    b = b_ref[0, 0]
    # y_m = sum_d w_d * x_md  -> (TM, 1). VPU multiply + XLU reduce; the kernel
    # is HBM-bandwidth bound so this hides entirely under the DMA.
    y = jnp.sum(x * w, axis=-1, keepdims=True)
    t = jnp.tanh(y + b)                       # (TM, 1), EUP
    # out = x + u * tanh(.)  (outer product via broadcasting), cast at store.
    o_ref[...] = (x + t * u).astype(o_ref.dtype)


def planar_flow(x, w, u, b, *, tm_max=1024):
    """x: (N, c, d, d, d); w, u: (d, d, d); b: (1,) -> (N, c, d, d, d)."""
    N, c, d = x.shape[0], x.shape[1], x.shape[2]
    M = N * c
    D = d * d * d

    x2 = x.reshape(M, D)                       # keep caller's dtype (no upcast)
    w2 = w.reshape(1, D).astype(jnp.float32)
    u2 = u.reshape(1, D).astype(jnp.float32)
    b2 = b.reshape(1, 1).astype(jnp.float32)

    # Row tile: multiple of 8 sublanes; for D=512 f32 this is <= 2 MiB/tile,
    # ~8 MiB total with double-buffered in+out -> well under default VMEM
    # limits on every generation (incl. v7x).
    TM = min(tm_max, _round_up(M, 8))
    grid = (pl.cdiv(M, TM),)

    out2 = pl.pallas_call(
        planar_flow_kernel,
        out_shape=jax.ShapeDtypeStruct((M, D), x.dtype),
        grid=grid,
        in_specs=[
            pl.BlockSpec((TM, D), lambda i: (i, 0)),
            pl.BlockSpec((1, D), lambda i: (0, 0)),   # w: resident across grid
            pl.BlockSpec((1, D), lambda i: (0, 0)),   # u: resident across grid
            pl.BlockSpec((1, 1), lambda i: (0, 0), memory_space=pltpu.SMEM),
        ],
        out_specs=pl.BlockSpec((TM, D), lambda i: (i, 0)),
        compiler_params=pltpu.CompilerParams(
            dimension_semantics=("parallel",),  # independent row-tiles -> 2 TCs on v7x
        ),
    )(x2, w2, u2, b2)

    return out2.reshape(x.shape)


def planar_flow_ref(x, w, u, b):
    """Pure-JAX reference mirroring the PyTorch forward."""
    y = jnp.einsum('ijk,acijk->ac', w, x)
    y = jnp.tanh(y + b)
    y = jnp.einsum('ijk,ac->acijk', u, y)
    return x + y


if __name__ == "__main__":
    # Small shapes: N=2, c=4, d=8  -> x: (2, 4, 8, 8, 8), M=8, D=512
    N, c, d = 2, 4, 8
    key = jax.random.PRNGKey(0)
    kx, ku, kw, kb = jax.random.split(key, 4)

    x = jax.random.normal(kx, (N, c, d, d, d), dtype=jnp.float32)
    # Deterministic parameter init matching the module's shapes/distributions:
    u = 2.0 * jax.random.uniform(ku, (d, d, d), dtype=jnp.float32) - 1.0
    w = 2.0 * jax.random.uniform(kw, (d, d, d), dtype=jnp.float32) - 1.0
    b = 2.0 * jax.random.normal(kb, (1,), dtype=jnp.float32) - 1.0

    out = planar_flow(x, w, u, b)
    out = jax.block_until_ready(out)

    ref = planar_flow_ref(x, w, u, b)
    assert out.shape == (N, c, d, d, d)
    assert jnp.allclose(out, ref, atol=1e-5, rtol=1e-5), "mismatch vs reference"

    print("KERNEL_OK")
</pallas_src>

<mosaic_0001>
module attributes {stable_mosaic.version = 11 : i64} {
  func.func @planar_flow_kernel(%arg0: i32, %arg1: memref<8x512xf32, #tpu.memory_space<vmem>>, %arg2: memref<1x512xf32, #tpu.memory_space<vmem>>, %arg3: memref<1x512xf32, #tpu.memory_space<vmem>>, %arg4: memref<1x1xf32, #tpu.memory_space<smem>>, %arg5: memref<8x512xf32, #tpu.memory_space<vmem>>) attributes {dimension_semantics = [#tpu.dimension_semantics<parallel>], iteration_bounds = array<i64: 1>, scalar_prefetch = 0 : i64, scratch_operands = 0 : i64, tpu.core_type = #tpu.core_type<tc>, window_params = [{transform_indices = @transform_0, window_bounds = array<i64: 8, 512>}, {pipeline_mode = #tpu.pipeline_mode<synchronous>, transform_indices = @transform_1, window_bounds = array<i64: 1, 512>}, {pipeline_mode = #tpu.pipeline_mode<synchronous>, transform_indices = @transform_2, window_bounds = array<i64: 1, 512>}, {transform_indices = @transform_3, window_bounds = array<i64: 1, 1>}, {transform_indices = @transform_4, window_bounds = array<i64: 8, 512>}]} {
    %c0 = arith.constant 0 : index
    %c0_0 = arith.constant 0 : index
    %0 = vector.load %arg1[%c0, %c0_0] : memref<8x512xf32, #tpu.memory_space<vmem>>, vector<8x512xf32>
    %c0_1 = arith.constant 0 : index
    %c0_2 = arith.constant 0 : index
    %1 = vector.load %arg2[%c0_1, %c0_2] : memref<1x512xf32, #tpu.memory_space<vmem>>, vector<1x512xf32>
    %c0_3 = arith.constant 0 : index
    %c0_4 = arith.constant 0 : index
    %2 = vector.load %arg3[%c0_3, %c0_4] : memref<1x512xf32, #tpu.memory_space<vmem>>, vector<1x512xf32>
    %c0_5 = arith.constant 0 : index
    %c0_6 = arith.constant 0 : index
    %3 = memref.load %arg4[%c0_5, %c0_6] : memref<1x1xf32, #tpu.memory_space<smem>>
    %4 = vector.broadcast %1 : vector<1x512xf32> to vector<8x512xf32>
    %5 = arith.mulf %0, %4 : vector<8x512xf32>
    %cst = arith.constant dense<0.000000e+00> : vector<8xf32>
    %6 = vector.multi_reduction <add>, %5, %cst [1] : vector<8x512xf32> to vector<8xf32>
    %7 = vector.shape_cast %6 : vector<8xf32> to vector<8x1xf32>
    %8 = vector.broadcast %3 : f32 to vector<8x1xf32>
    %9 = arith.addf %7, %8 : vector<8x1xf32>
    %10 = math.tanh %9 : vector<8x1xf32>
    %11 = vector.broadcast %10 : vector<8x1xf32> to vector<8x512xf32>
    %12 = vector.broadcast %2 : vector<1x512xf32> to vector<8x512xf32>
    %13 = arith.mulf %11, %12 : vector<8x512xf32>
    %14 = arith.addf %0, %13 : vector<8x512xf32>
    %c0_7 = arith.constant 0 : index
    %c0_8 = arith.constant 0 : index
    %15 = vector.load %arg5[%c0_7, %c0_8] : memref<8x512xf32, #tpu.memory_space<vmem>>, vector<8x512xf32>
    tpu.vector_store %arg5[%c0_7, %c0_8], %14 {strides = array<i32>} : memref<8x512xf32, #tpu.memory_space<vmem>>, vector<8x512xf32>,
    return
  }
  func.func @transform_0(%arg0: i32) -> (i32, i32) {
    %c0_i32 = arith.constant 0 : i32
    %c0_i32_0 = arith.constant 0 : i32
    return %arg0, %c0_i32 : i32, i32
  }
  func.func @transform_1(%arg0: i32) -> (i32, i32) {
    %c0_i32 = arith.constant 0 : i32
    %c0_i32_0 = arith.constant 0 : i32
    %c0_i32_1 = arith.constant 0 : i32
    return %c0_i32, %c0_i32_0 : i32, i32
  }
  func.func @transform_2(%arg0: i32) -> (i32, i32) {
    %c0_i32 = arith.constant 0 : i32
    %c0_i32_0 = arith.constant 0 : i32
    %c0_i32_1 = arith.constant 0 : i32
    return %c0_i32, %c0_i32_0 : i32, i32
  }
  func.func @transform_3(%arg0: i32) -> (i32, i32) {
    %c0_i32 = arith.constant 0 : i32
    %c0_i32_0 = arith.constant 0 : i32
    %c0_i32_1 = arith.constant 0 : i32
    return %c0_i32, %c0_i32_0 : i32, i32
  }
  func.func @transform_4(%arg0: i32) -> (i32, i32) {
    %c0_i32 = arith.constant 0 : i32
    %c0_i32_0 = arith.constant 0 : i32
    return %arg0, %c0_i32 : i32, i32
  }
}

</mosaic_0001>

<llo_original>
// kernel: tpu_custom_call.1
$region0: #{tpu_custom_call.1}
  #allocation0 [shape = 'u32[]', space=smem, size = 0x4, offset = 0x4, fixed_abs, tag = 'smem constant byte address 0x4 - core index']
  #allocation1 [shape = 'u32[72,128]{1,0:T(1,128)}', space=vmem, size = 0x9000, scoped, tag = 'internal scratch']
  #allocation2 [shape = 'f32[1,1]{1,0:T(1,128)S(6)}', space=smem, size = 0x200, scoped, tag = 'scoped memory for tpu_custom_call.1']
  %s0 = inlined_call_operand.hbm [shape: f32[8,512], index: 0, kind: input, shape index: {}]
  %s1 = inlined_call_operand.hbm [shape: f32[1,512], index: 1, kind: input, shape index: {}]
  %s2 = inlined_call_operand.hbm [shape: f32[1,512], index: 2, kind: input, shape index: {}]
  %s3 = inlined_call_operand.<no memory space> [shape: f32[1,1], index: 3, kind: input, shape index: {}]
  %s4 = inlined_call_operand.hbm [shape: f32[8,512], index: 4, kind: output, shape index: {}]
  %s5 = sld [smem:[#allocation0]]
  $region38: #{tpu_custom_call.1} parent=0
    _
  %s7 = ssub.s32 1, %s5
  %s8 = scalar_select 0, %s7, %s5
  %9 = sst [smem:[#allocation2]] %s3
  $region1: #{tpu_custom_call.1} parent=0
    #allocation3 [shape = 'u8[16384]{0}', space=vmem, size = 0x4000, scoped, tag = 'input window, operand 0, single buffered']
    #allocation4 [shape = 's32[1]{0}', space=sflag, size = 0x4, scoped, tag = 'scoped memory for tpu_custom_call.1']
    #allocation5 [shape = 's32[1]{0}', space=sflag, size = 0x4, scoped, tag = 'scoped memory for tpu_custom_call.1']
    #allocation6 [shape = 'u8[2048]{0}', space=vmem, size = 0x800, scoped, tag = 'input window, operand 1, single buffered']
    #allocation7 [shape = 's32[1]{0}', space=sflag, size = 0x4, scoped, tag = 'scoped memory for tpu_custom_call.1']
    #allocation8 [shape = 'u8[2048]{0}', space=vmem, size = 0x800, scoped, tag = 'input window, operand 2, single buffered']
    #allocation9 [shape = 'u8[16384]{0}', space=vmem, size = 0x4000, scoped, tag = 'output window, operand 0, single buffered']
    %10 = vsyncpa [#allocation4], 0
    %11 = vsyncpa [#allocation7], 0
    %12 = vsyncpa [#allocation5], 0
    // Predicated region
    $region2: #{tpu_custom_call.1} parent=1 // pred_check
      _
    $region3: #{tpu_custom_call.1} parent=1 // pred_check_branch
      %14 = sbr.rel (0) target = $region5
    $region4: #{tpu_custom_call.1} parent=1 // pred_region
      %16 = vsyncadd [#allocation4], 0
      %s18 = sshll.u32 %s0, 4
      %s19 = int_to_ptr.hbm [resolvable:$true] %s18
      %s20 = sshll.u32 [#allocation3], 4
      %s21 = int_to_ptr.vmem [resolvable:$true] %s20
      %23 = dma.hbm_to_vmem [thread:$0]  %s19, 512, %s21, [#allocation4]
    $region5: #{tpu_custom_call.1} parent=1 // pred_fallthru
      _
    // Predicated region
    $region6: #{tpu_custom_call.1} parent=1 // pred_check
      _
    $region7: #{tpu_custom_call.1} parent=1 // pred_check_branch
      %25 = sbr.rel (0) target = $region9
    $region8: #{tpu_custom_call.1} parent=1 // pred_region
      %27 = vsyncadd [#allocation7], 0
      %s29 = sshll.u32 %s1, 4
      %s30 = int_to_ptr.hbm [resolvable:$true] %s29
      %s31 = sshll.u32 [#allocation6], 4
      %s32 = int_to_ptr.vmem [resolvable:$true] %s31
      %34 = dma.hbm_to_vmem [thread:$0]  %s30, 64, %s32, [#allocation7]
    $region9: #{tpu_custom_call.1} parent=1 // pred_fallthru
      _
    // Predicated region
    $region10: #{tpu_custom_call.1} parent=1 // pred_check
      _
    $region11: #{tpu_custom_call.1} parent=1 // pred_check_branch
      %36 = sbr.rel (0) target = $region13
    $region12: #{tpu_custom_call.1} parent=1 // pred_region
      %38 = vsyncadd [#allocation7], 0
      %s40 = sshll.u32 %s2, 4
      %s41 = int_to_ptr.hbm [resolvable:$true] %s40
      %s42 = sshll.u32 [#allocation8], 4
      %s43 = int_to_ptr.vmem [resolvable:$true] %s42
      %45 = dma.hbm_to_vmem [thread:$0]  %s41, 64, %s43, [#allocation7]
    $region13: #{tpu_custom_call.1} parent=1 // pred_fallthru
      _
    // Predicated region
    $region14: #{tpu_custom_call.1} parent=1 // pred_check
      _
    $region15: #{tpu_custom_call.1} parent=1 // pred_check_branch
      %47 = sbr.rel (0) target = $region17
    $region16: #{tpu_custom_call.1} parent=1 // pred_region
      _
    $region17: #{tpu_custom_call.1} parent=1 // pred_fallthru
      _
    // Predicated region
    $region18: #{tpu_custom_call.1} parent=1 // pred_check
      _
    $region19: #{tpu_custom_call.1} parent=1 // pred_check_branch
      %49 = sbr.rel (0) target = $region21
    $region20: #{tpu_custom_call.1} parent=1 // pred_region
      %51 = dma.done [#allocation4], 512
    $region21: #{tpu_custom_call.1} parent=1 // pred_fallthru
      _
    // Predicated region
    $region22: #{tpu_custom_call.1} parent=1 // pred_check
      _
    $region23: #{tpu_custom_call.1} parent=1 // pred_check_branch
      %53 = sbr.rel (0) target = $region25
    $region24: #{tpu_custom_call.1} parent=1 // pred_region
      %55 = dma.done [#allocation7], 64
    $region25: #{tpu_custom_call.1} parent=1 // pred_fallthru
      _
    // Predicated region
    $region26: #{tpu_custom_call.1} parent=1 // pred_check
      _
    $region27: #{tpu_custom_call.1} parent=1 // pred_check_branch
      %57 = sbr.rel (0) target = $region29
    $region28: #{tpu_custom_call.1} parent=1 // pred_region
      %59 = dma.done [#allocation7], 64
    $region29: #{tpu_custom_call.1} parent=1 // pred_fallthru
      _
    %v60 = vld [vmem:[#allocation3] sm:$0xff]
    %v61 = vld [vmem:[#allocation3 + $0x8] sm:$0xff]
    %v62 = vld [vmem:[#allocation3 + $0x10] sm:$0xff]
    %v63 = vld [vmem:[#allocation3 + $0x18] sm:$0xff]
    %v64 = vld [vmem:[#allocation6] sm:$0xf]
    %v65 = vld [vmem:[#allocation8] sm:$0xf]
    %s66 = sld [smem:[#allocation2]]
    %v68 = vperm.slane %v64, 0
    %v69 = vperm.slane %v64, 1
    %v70 = vperm.slane %v64, 2
    %v71 = vperm.slane %v64, 3
    %v76 = vmul.f32 %v60, %v68
    %v77 = vmul.f32 %v61, %v69
    %v78 = vmul.f32 %v62, %v70
    %v79 = vmul.f32 %v63, %v71
    %v80 = vadd.f32 %v76, %v77
    %v81 = vadd.f32 %v80, %v78
    %v82 = vadd.f32 %v81, %v79
    %83 = vadd.xlane.f32.xlu0 %v82
    %v84 = vpop.xlane.xlu0 %83
    %v85 = vstv %s66
    %v86 = vadd.f32 %v84, %v85
    %v87 = vtanh.pop %v86
    %v89 = vperm.slane %v65, 0
    %v90 = vperm.slane %v65, 1
    %v91 = vperm.slane %v65, 2
    %v92 = vperm.slane %v65, 3
    %v97 = vmul.f32 %v87, %v89
    %v98 = vmul.f32 %v87, %v90
    %v99 = vmul.f32 %v87, %v91
    %v100 = vmul.f32 %v87, %v92
    %v101 = vadd.f32 %v60, %v97
    %v102 = vadd.f32 %v61, %v98
    %v103 = vadd.f32 %v62, %v99
    %v104 = vadd.f32 %v63, %v100
    %105 = vst [vmem:[#allocation9] sm:$0xff] %v101
    %106 = vst [vmem:[#allocation9 + $0x8] sm:$0xff] %v102
    %107 = vst [vmem:[#allocation9 + $0x10] sm:$0xff] %v103
    %108 = vst [vmem:[#allocation9 + $0x18] sm:$0xff] %v104
    // Predicated region
    $region30: #{tpu_custom_call.1} parent=1 // pred_check
      _
    $region31: #{tpu_custom_call.1} parent=1 // pred_check_branch
      %110 = sbr.rel (0) target = $region33
    $region32: #{tpu_custom_call.1} parent=1 // pred_region
      %112 = vsyncadd [#allocation5], 0
      %s114 = sshll.u32 [#allocation9], 4
      %s115 = int_to_ptr.vmem [resolvable:$true] %s114
      %s116 = sshll.u32 %s4, 4
      %s117 = int_to_ptr.hbm [resolvable:$true] %s116
      %119 = dma.vmem_to_hbm [thread:$0]  %s115, 512, %s117, [#allocation5]
    $region33: #{tpu_custom_call.1} parent=1 // pred_fallthru
      _
    // Predicated region
    $region34: #{tpu_custom_call.1} parent=1 // pred_check
      _
    $region35: #{tpu_custom_call.1} parent=1 // pred_check_branch
      %121 = sbr.rel (0) target = $region37
    $region36: #{tpu_custom_call.1} parent=1 // pred_region
      %123 = dma.done [#allocation5], 512
    $region37: #{tpu_custom_call.1} parent=1 // pred_fallthru
      _
    %124 = vsyncpa [#allocation4], 1
    %125 = vsyncpa [#allocation7], 1
    %126 = vsyncpa [#allocation5], 1

</llo_original>
